<compile_context>
chip_gen: v7x
topology: tpu7x:2x2x1
jax: 0.10.0
libtpu: 0.0.40
codegen_flags: <defaults>
</compile_context>

<pallas_src>
import functools

import jax
import jax.numpy as jnp
from jax import lax
from jax.experimental import pallas as pl
from jax.experimental.pallas import tpu as pltpu


_LANE = 128
_NEG_BIG = -9e15            # matches the PyTorch reference's zero_vec
_VMEM_CAP = 64 * 2**20      # valid scoped limit on every generation (v7x = 64 MiB)


def _round_up(x, m):
    return ((x + m - 1) // m) * m


def _vmem_limit(block_bytes, temp_bytes=0):
    est = 2 * block_bytes + temp_bytes           # double-buffered blocks + live temps
    return int(min(_VMEM_CAP, max(32 * 2**20, est)))


# ---------------------------------------------------------------------------
# Kernel 1: fused per-layer projection (one row tile of nodes per grid step).
# ---------------------------------------------------------------------------
def _proj_kernel(x_ref, w_ref, a2_ref, v_ref, s1_ref, s2t_ref):
    """x_ref:   (Tq, Din)       bf16  node features (query-row tile)
       w_ref:   (Din, Dv + S1)  bf16  [per-head W | pad | per-head W@a1 | pad]
       a2_ref:  (Din, S2)       bf16  per-head W@a2 columns (+ zero pad)
       v_ref:   (Tq, Dv)        bf16  out: Wh value slab (row tile)
       s1_ref:  (Tq, S1)        f32   out: per-head Wh@a1 (query-side scores)
       s2t_ref: (S2, Tq)        f32   out: per-head Wh@a2, already transposed
    """
    x = x_ref[...]
    hw = jnp.dot(x, w_ref[...], preferred_element_type=jnp.float32)
    dv = v_ref.shape[1]
    v_ref[...] = hw[:, :dv].astype(v_ref.dtype)
    s1_ref[...] = hw[:, dv:dv + s1_ref.shape[1]]
    # (S2, Tq) = a2^T @ x^T directly (no XLU transpose materialized).
    s2t_ref[...] = lax.dot_general(
        a2_ref[...], x, dimension_numbers=(((0,), (1,)), ((), ())),
        preferred_element_type=jnp.float32)


# ---------------------------------------------------------------------------
# Kernel 2: masked-softmax attention (all heads of one layer) + fused ELU.
# ---------------------------------------------------------------------------
def _attn_kernel(adj_ref, s1_ref, s2t_ref, v_ref, out_ref, *, alpha, nheads, dv):
    """adj_ref: (Tq, Nk)  int8  adjacency rows (nonzero => edge)
       s1_ref:  (Tq, S1)  f32   per-head query scores (row tile)
       s2t_ref: (S2, Nk)  f32   per-head key scores, transposed (full graph)
       v_ref:   (Nk, Dv)  bf16  Wh value slab (full graph)
       out_ref: (Tq, Dw)        per-head outputs, lane-dense (128-padded)
    """
    f32 = jnp.float32
    alpha_f = f32(alpha)
    tq = adj_ref.shape[0]

    # Additive mask bias, built once per row tile and reused by every head.
    bias = jnp.where(adj_ref[...] != 0, f32(0.0), f32(_NEG_BIG))     # (Tq, Nk)

    pieces = []
    for i in range(nheads):                                          # unrolled
        e = s1_ref[:, i:i + 1] + s2t_ref[i:i + 1, :]                 # (Tq, Nk)
        e = jnp.maximum(e, alpha_f * e)                              # LeakyReLU
        logits = e + bias                                            # mask == add
        m = jnp.max(logits, axis=1, keepdims=True)
        p = jnp.exp(logits - m)                                      # un-normalized
        denom = jnp.sum(p, axis=1, keepdims=True)                    # (Tq, 1)
        hp = jnp.dot(p.astype(jnp.bfloat16), v_ref[:, i * dv:(i + 1) * dv],
                     preferred_element_type=f32)                     # (Tq, dv)
        hp = hp / denom                                              # post-PV normalize
        # ELU; clamp exp argument so the discarded branch never overflows.
        pieces.append(jnp.where(hp > 0, hp,
                                jnp.exp(jnp.minimum(hp, 0.0)) - 1.0))
    pad = out_ref.shape[1] - nheads * dv
    if pad:
        pieces.append(jnp.zeros((tq, pad), f32))
    out = pieces[0] if len(pieces) == 1 else jnp.concatenate(pieces, axis=1)
    out_ref[...] = out.astype(out_ref.dtype)


# ---------------------------------------------------------------------------
# pallas_call wrappers (row-tiled, "parallel" grid, sized VMEM limits).
# ---------------------------------------------------------------------------
def _run_proj(x_pad, w_slab, a2_slab, dvp, tq, *, s1_cols, s2_rows):
    n_pad, din_p = x_pad.shape
    grid = (n_pad // tq,)
    block_bytes = (tq * din_p * 2 + w_slab.size * 2 + a2_slab.size * 2
                   + tq * dvp * 2 + tq * s1_cols * 4 + s2_rows * tq * 4)
    return pl.pallas_call(
        _proj_kernel,
        grid=grid,
        in_specs=[
            pl.BlockSpec((tq, din_p), lambda q: (q, 0)),          # x rows
            pl.BlockSpec(w_slab.shape, lambda q: (0, 0)),         # fused weights
            pl.BlockSpec(a2_slab.shape, lambda q: (0, 0)),        # a2 columns
        ],
        out_specs=[
            pl.BlockSpec((tq, dvp), lambda q: (q, 0)),            # value slab rows
            pl.BlockSpec((tq, s1_cols), lambda q: (q, 0)),        # query scores
            pl.BlockSpec((s2_rows, tq), lambda q: (0, q)),        # key scores (T)
        ],
        out_shape=[
            jax.ShapeDtypeStruct((n_pad, dvp), jnp.bfloat16),
            jax.ShapeDtypeStruct((n_pad, s1_cols), jnp.float32),
            jax.ShapeDtypeStruct((s2_rows, n_pad), jnp.float32),
        ],
        compiler_params=pltpu.CompilerParams(
            dimension_semantics=("parallel",),
            vmem_limit_bytes=_vmem_limit(block_bytes)),
    )(x_pad, w_slab, a2_slab)


def _run_attn(adj_pad, s1, s2t, v, tq, *, alpha, nheads, dv, out_width, out_dtype):
    n_pad = adj_pad.shape[0]
    grid = (n_pad // tq,)
    out_bytes = tq * out_width * jnp.dtype(out_dtype).itemsize
    block_bytes = (tq * n_pad * 1 + tq * s1.shape[1] * 4 + s2t.shape[0] * n_pad * 4
                   + n_pad * v.shape[1] * 2 + out_bytes)
    temp_bytes = 5 * tq * n_pad * 4                   # bias / e / logits / p f32
    cost = pl.CostEstimate(
        flops=int(2 * n_pad * n_pad * nheads * dv + 12 * n_pad * n_pad * nheads),
        transcendentals=int(n_pad * n_pad * nheads),
        bytes_accessed=int(adj_pad.size + s1.size * 4 + s2t.size * 4
                           + v.size * 2 + n_pad * out_width
                           * jnp.dtype(out_dtype).itemsize))
    kernel = functools.partial(_attn_kernel, alpha=float(alpha),
                               nheads=nheads, dv=dv)
    return pl.pallas_call(
        kernel,
        grid=grid,
        in_specs=[
            pl.BlockSpec((tq, n_pad), lambda q: (q, 0)),          # adj rows
            pl.BlockSpec((tq, s1.shape[1]), lambda q: (q, 0)),    # query scores
            pl.BlockSpec(s2t.shape, lambda q: (0, 0)),            # key scores (T)
            pl.BlockSpec(v.shape, lambda q: (0, 0)),              # value slab
        ],
        out_specs=pl.BlockSpec((tq, out_width), lambda q: (q, 0)),
        out_shape=jax.ShapeDtypeStruct((n_pad, out_width), out_dtype),
        compiler_params=pltpu.CompilerParams(
            dimension_semantics=("parallel",),
            vmem_limit_bytes=_vmem_limit(block_bytes, temp_bytes)),
        cost_estimate=cost,
    )(adj_pad, s1, s2t, v)


# ---------------------------------------------------------------------------
# Host-side parameter fusion / padding.
# ---------------------------------------------------------------------------
def _build_layer_slabs(heads, din, din_p, dv_slot, s1_cols, s2_rows):
    """heads: list of (W (din, dout), a (2*dout, 1)) f32 parameter pairs.

    Returns (w_slab (din_p, dvp + s1_cols) bf16, a2_slab (din_p, s2_rows) bf16, dvp),
    where head i's W occupies value columns [i*dv_slot, i*dv_slot + dout) and the
    folded W@a1 / W@a2 projections occupy column i of the trailing / a2 slabs.
    """
    nheads = len(heads)
    dout = heads[0][0].shape[1]
    dvp = _round_up(nheads * dv_slot, _LANE)
    w_slab = jnp.zeros((din_p, dvp + s1_cols), jnp.float32)
    a2_slab = jnp.zeros((din_p, s2_rows), jnp.float32)
    for i, (W, a) in enumerate(heads):
        a1, a2 = a[:dout, :], a[dout:, :]
        w_slab = w_slab.at[:din, i * dv_slot:i * dv_slot + dout].set(W)
        w_slab = w_slab.at[:din, dvp + i:dvp + i + 1].set(W @ a1)
        a2_slab = a2_slab.at[:din, i:i + 1].set(W @ a2)
    return w_slab.astype(jnp.bfloat16), a2_slab.astype(jnp.bfloat16), dvp


def gat_forward(x, adj, params, *, alpha, block_q=256):
    """GAT.forward (eval mode: dropouts are identity) with tiled Pallas kernels."""
    heads = params["heads"]
    W_out, a_out = params["out"]
    nheads = len(heads)
    nhid = heads[0][0].shape[1]
    n, nfeat = x.shape

    tq = min(block_q, _round_up(n, _LANE))            # 128-aligned query-row tile
    n_pad = _round_up(n, tq)
    f_pad = _round_up(nfeat, _LANE)
    s1_cols = _round_up(max(nheads, 1), _LANE)
    s2_rows = _round_up(max(nheads, 1), 8)

    # Pad + cast inputs (padded rows/cols are zero => masked out by the bias).
    x_pad = jnp.zeros((n_pad, f_pad), jnp.bfloat16).at[:n, :nfeat].set(
        x.astype(jnp.bfloat16))
    adj_pad = jnp.zeros((n_pad, n_pad), jnp.int8).at[:n, :n].set(
        (adj != 0).astype(jnp.int8))

    # Layer-1 slabs: heads packed at stride nhid, a1/a2 folded into the matmul.
    w1, a21, dvp1 = _build_layer_slabs(heads, nfeat, f_pad, nhid, s1_cols, s2_rows)
    # Layer-2 slabs: single head, value columns padded to a full 128-lane slot
    # so the final PV matmul / store are lane-dense.
    nhid_p = _round_up(nhid, _LANE)
    w2, a22, dvp2 = _build_layer_slabs([(W_out, a_out)], nheads * nhid, dvp1,
                                       nhid_p, _LANE, 8)

    # ----- layer 1: nheads attention heads, ELU, concat (stays 128-padded) -----
    v1, s1a, s2t1 = _run_proj(x_pad, w1, a21, dvp1, tq,
                              s1_cols=s1_cols, s2_rows=s2_rows)
    concat = _run_attn(adj_pad, s1a, s2t1, v1, tq, alpha=alpha, nheads=nheads,
                       dv=nhid, out_width=dvp1, out_dtype=jnp.bfloat16)

    # ----- layer 2: out_att (concat=False) + GAT.forward's final F.elu --------
    v2, s1b, s2t2 = _run_proj(concat, w2, a22, dvp2, tq, s1_cols=_LANE, s2_rows=8)
    out = _run_attn(adj_pad, s1b, s2t2, v2, tq, alpha=alpha, nheads=1,
                    dv=dvp2, out_width=dvp2, out_dtype=jnp.float32)
    return out[:n, :nhid]


# ---------------------------------------------------------------------------
# Pure-jnp reference (mirrors the kernel's bf16/f32 precision & ordering; versus
# a pure-f32 PyTorch GAT the outputs agree at the ~1e-2 level due to bf16).
# ---------------------------------------------------------------------------
def _reference_forward(x, adj, params, *, alpha):
    bf16, f32 = jnp.bfloat16, jnp.float32

    def rnd(t):
        return t.astype(bf16).astype(f32)

    mask = adj > 0

    def attn_layer(h_b, W, a):
        dout = W.shape[1]
        wh = h_b @ rnd(W)                              # (N, dout), f32 accum
        wh1 = h_b @ rnd(W @ a[:dout, :])               # folded a1 (as in kernel)
        wh2 = h_b @ rnd(W @ a[dout:, :])               # folded a2
        e = wh1 + wh2.T
        e = jnp.maximum(e, alpha * e)                  # LeakyReLU
        logits = jnp.where(mask, e, f32(_NEG_BIG))
        m = jnp.max(logits, axis=1, keepdims=True)
        p = jnp.exp(logits - m)
        denom = jnp.sum(p, axis=1, keepdims=True)
        hp = (p.astype(bf16).astype(f32) @ rnd(wh)) / denom
        return jnp.where(hp > 0, hp, jnp.exp(jnp.minimum(hp, 0.0)) - 1.0)  # ELU

    h_b = rnd(x)
    cat = jnp.concatenate([attn_layer(h_b, W, a) for (W, a) in params["heads"]],
                          axis=1)
    W_out, a_out = params["out"]
    return attn_layer(rnd(cat), W_out, a_out)


# ---------------------------------------------------------------------------
# Parameter init (matches nn.init.xavier_uniform_(gain=1.414)).
# ---------------------------------------------------------------------------
def xavier_uniform(key, shape, gain):
    fan_in, fan_out = shape[0], shape[1]
    bound = gain * jnp.sqrt(6.0 / (fan_in + fan_out))
    return jax.random.uniform(key, shape, dtype=jnp.float32,
                              minval=-bound, maxval=bound)


def init_gat_params(key, nfeat, nhid, nheads, gain=1.414):
    params = {"heads": [], "out": None}
    keys = jax.random.split(key, 2 * nheads + 2)
    for i in range(nheads):
        W = xavier_uniform(keys[2 * i], (nfeat, nhid), gain)
        a = xavier_uniform(keys[2 * i + 1], (2 * nhid, 1), gain)
        params["heads"].append((W, a))
    W_out = xavier_uniform(keys[-2], (nhid * nheads, nhid), gain)
    a_out = xavier_uniform(keys[-1], (2 * nhid, 1), gain)
    params["out"] = (W_out, a_out)
    return params


if __name__ == "__main__":
    # Small, module-consistent shapes.
    N = 8          # number of graph nodes
    nfeat = 32     # input feature dim
    nhid = 16      # hidden dim per head
    nheads = 4     # attention heads
    alpha = 0.2    # LeakyReLU negative slope
    dropout = 0.6  # unused (eval mode)

    key = jax.random.PRNGKey(0)
    k_x, k_adj, k_param = jax.random.split(key, 3)

    x = jax.random.normal(k_x, (N, nfeat), dtype=jnp.float32)

    # Random symmetric binary adjacency with self loops.
    raw = jax.random.uniform(k_adj, (N, N))
    adj = (raw > 0.5).astype(jnp.float32)
    adj = jnp.maximum(adj, adj.T)
    adj = jnp.maximum(adj, jnp.eye(N, dtype=jnp.float32))

    params = init_gat_params(k_param, nfeat, nhid, nheads)

    out = gat_forward(x, adj, params, alpha=alpha)
    out = jax.block_until_ready(out)

    assert out.shape == (N, nhid), out.shape
    assert bool(jnp.all(jnp.isfinite(out)))

    ref = _reference_forward(x, adj, params, alpha=alpha)
    err = float(jnp.max(jnp.abs(out - ref)))
    assert err < 5e-3, f"max abs error vs reference = {err}"

    print("KERNEL_OK")
</pallas_src>

<mosaic_0001>
module attributes {stable_mosaic.version = 11 : i64} {
  func.func @_proj_kernel(%arg0: i32, %arg1: memref<128x128xbf16, #tpu.memory_space<vmem>>, %arg2: memref<128x256xbf16, #tpu.memory_space<vmem>>, %arg3: memref<128x8xbf16, #tpu.memory_space<vmem>>, %arg4: memref<128x128xbf16, #tpu.memory_space<vmem>>, %arg5: memref<128x128xf32, #tpu.memory_space<vmem>>, %arg6: memref<8x128xf32, #tpu.memory_space<vmem>>) attributes {dimension_semantics = [#tpu.dimension_semantics<parallel>], iteration_bounds = array<i64: 1>, scalar_prefetch = 0 : i64, scratch_operands = 0 : i64, tpu.core_type = #tpu.core_type<tc>, window_params = [{transform_indices = @transform_0, window_bounds = array<i64: 128, 128>}, {pipeline_mode = #tpu.pipeline_mode<synchronous>, transform_indices = @transform_1, window_bounds = array<i64: 128, 256>}, {pipeline_mode = #tpu.pipeline_mode<synchronous>, transform_indices = @transform_2, window_bounds = array<i64: 128, 8>}, {transform_indices = @transform_3, window_bounds = array<i64: 128, 128>}, {transform_indices = @transform_4, window_bounds = array<i64: 128, 128>}, {transform_indices = @transform_5, window_bounds = array<i64: 8, 128>}]} {
    %c0 = arith.constant 0 : index
    %c0_0 = arith.constant 0 : index
    %0 = vector.load %arg1[%c0, %c0_0] : memref<128x128xbf16, #tpu.memory_space<vmem>>, vector<128x128xbf16>
    %c0_1 = arith.constant 0 : index
    %c0_2 = arith.constant 0 : index
    %1 = vector.load %arg2[%c0_1, %c0_2] : memref<128x256xbf16, #tpu.memory_space<vmem>>, vector<128x256xbf16>
    %cst = arith.constant dense<0.000000e+00> : vector<128x256xf32>
    %2 = tpu.matmul %0, %1, %cst {dimension_numbers = #tpu.dot_dimension_numbers<[1], [0], [0], [1], [0, 0, 1, 1], [], []>} : vector<128x128xbf16>, vector<128x256xbf16>, vector<128x256xf32> -> vector<128x256xf32>
    %3 = vector.extract_strided_slice %2 {offsets = [0, 0], sizes = [128, 128], strides = [1, 1]} : vector<128x256xf32> to vector<128x128xf32>
    %4 = arith.truncf %3 : vector<128x128xf32> to vector<128x128xbf16>
    %c0_3 = arith.constant 0 : index
    %c0_4 = arith.constant 0 : index
    %5 = vector.load %arg4[%c0_3, %c0_4] : memref<128x128xbf16, #tpu.memory_space<vmem>>, vector<128x128xbf16>
    tpu.vector_store %arg4[%c0_3, %c0_4], %4 {strides = array<i32>} : memref<128x128xbf16, #tpu.memory_space<vmem>>, vector<128x128xbf16>,
    %6 = vector.extract_strided_slice %2 {offsets = [0, 128], sizes = [128, 128], strides = [1, 1]} : vector<128x256xf32> to vector<128x128xf32>
    %c0_5 = arith.constant 0 : index
    %c0_6 = arith.constant 0 : index
    %7 = vector.load %arg5[%c0_5, %c0_6] : memref<128x128xf32, #tpu.memory_space<vmem>>, vector<128x128xf32>
    tpu.vector_store %arg5[%c0_5, %c0_6], %6 {strides = array<i32>} : memref<128x128xf32, #tpu.memory_space<vmem>>, vector<128x128xf32>,
    %c0_7 = arith.constant 0 : index
    %c0_8 = arith.constant 0 : index
    %8 = vector.load %arg3[%c0_7, %c0_8] : memref<128x8xbf16, #tpu.memory_space<vmem>>, vector<128x8xbf16>
    %cst_9 = arith.constant dense<0.000000e+00> : vector<8x128xf32>
    %9 = tpu.matmul %8, %0, %cst_9 {dimension_numbers = #tpu.dot_dimension_numbers<[0], [1], [1], [0], [0, 1, 1, 0], [], []>} : vector<128x8xbf16>, vector<128x128xbf16>, vector<8x128xf32> -> vector<8x128xf32>
    %c0_10 = arith.constant 0 : index
    %c0_11 = arith.constant 0 : index
    %10 = vector.load %arg6[%c0_10, %c0_11] : memref<8x128xf32, #tpu.memory_space<vmem>>, vector<8x128xf32>
    tpu.vector_store %arg6[%c0_10, %c0_11], %9 {strides = array<i32>} : memref<8x128xf32, #tpu.memory_space<vmem>>, vector<8x128xf32>,
    return
  }
  func.func @transform_0(%arg0: i32) -> (i32, i32) {
    %c0_i32 = arith.constant 0 : i32
    %c0_i32_0 = arith.constant 0 : i32
    return %arg0, %c0_i32 : i32, i32
  }
  func.func @transform_1(%arg0: i32) -> (i32, i32) {
    %c0_i32 = arith.constant 0 : i32
    %c0_i32_0 = arith.constant 0 : i32
    %c0_i32_1 = arith.constant 0 : i32
    return %c0_i32, %c0_i32_0 : i32, i32
  }
  func.func @transform_2(%arg0: i32) -> (i32, i32) {
    %c0_i32 = arith.constant 0 : i32
    %c0_i32_0 = arith.constant 0 : i32
    %c0_i32_1 = arith.constant 0 : i32
    return %c0_i32, %c0_i32_0 : i32, i32
  }
  func.func @transform_3(%arg0: i32) -> (i32, i32) {
    %c0_i32 = arith.constant 0 : i32
    %c0_i32_0 = arith.constant 0 : i32
    return %arg0, %c0_i32 : i32, i32
  }
  func.func @transform_4(%arg0: i32) -> (i32, i32) {
    %c0_i32 = arith.constant 0 : i32
    %c0_i32_0 = arith.constant 0 : i32
    return %arg0, %c0_i32 : i32, i32
  }
  func.func @transform_5(%arg0: i32) -> (i32, i32) {
    %c0_i32 = arith.constant 0 : i32
    %c0_i32_0 = arith.constant 0 : i32
    return %c0_i32, %arg0 : i32, i32
  }
}

</mosaic_0001>

<llo_original>
// kernel: tpu_custom_call.1
$region0: #{tpu_custom_call.1}
  #allocation0 [shape = 'u32[]', space=smem, size = 0x4, offset = 0x4, fixed_abs, tag = 'smem constant byte address 0x4 - core index']
  #allocation1 [shape = 'u32[144,128]{1,0:T(1,128)}', space=vmem, size = 0x12000, scoped, tag = 'internal scratch']
  %s0 = inlined_call_operand.vmem [shape: bf16[128,128], index: 0, kind: input, shape index: {}]
  %s1 = inlined_call_operand.hbm [shape: bf16[128,256], index: 1, kind: input, shape index: {}]
  %s2 = inlined_call_operand.vmem [shape: bf16[128,8], index: 2, kind: input, shape index: {}]
  %s3 = inlined_call_operand.hbm [shape: bf16[128,128], index: 3, kind: output, shape index: {0}]
  %s4 = inlined_call_operand.hbm [shape: f32[128,128], index: 4, kind: output, shape index: {1}]
  %s5 = inlined_call_operand.hbm [shape: f32[8,128], index: 5, kind: output, shape index: {2}]
  %6 = xla_tuple %s3, %s4, %s5
  %s7 = sld [smem:[#allocation0]]
  $region42: #{tpu_custom_call.1} parent=0
    _
  %s9 = ssub.s32 1, %s7
  %s10 = scalar_select 0, %s9, %s7
  $region1: #{tpu_custom_call.1} parent=0
    #allocation2 [shape = 'u8[65536]{0}', space=vmem, size = 0x10000, scoped, tag = 'input window, operand 1, single buffered']
    #allocation3 [shape = 's32[1]{0}', space=sflag, size = 0x4, scoped, tag = 'scoped memory for tpu_custom_call.1']
    #allocation4 [shape = 's32[1]{0}', space=sflag, size = 0x4, scoped, tag = 'scoped memory for tpu_custom_call.1']
    #allocation5 [shape = 'u8[32768]{0}', space=vmem, size = 0x8000, scoped, tag = 'output window, operand 0, single buffered']
    #allocation6 [shape = 'u8[65536]{0}', space=vmem, size = 0x10000, scoped, tag = 'output window, operand 1, single buffered']
    #allocation7 [shape = 's32[1]{0}', space=sflag, size = 0x4, scoped, tag = 'scoped memory for tpu_custom_call.1']
    #allocation8 [shape = 'u8[4096]{0}', space=vmem, size = 0x1000, scoped, tag = 'output window, operand 2, single buffered']
    %11 = vsyncpa [#allocation3], 0
    %12 = vsyncpa [#allocation4], 0
    %13 = vsyncpa [#allocation7], 0
    // Predicated region
    $region2: #{tpu_custom_call.1} parent=1 // pred_check
      _
    $region3: #{tpu_custom_call.1} parent=1 // pred_check_branch
      %15 = sbr.rel (0) target = $region5
    $region4: #{tpu_custom_call.1} parent=1 // pred_region
      _
    $region5: #{tpu_custom_call.1} parent=1 // pred_fallthru
      _
    // Predicated region
    $region6: #{tpu_custom_call.1} parent=1 // pred_check
      _
    $region7: #{tpu_custom_call.1} parent=1 // pred_check_branch
      %17 = sbr.rel (0) target = $region9
    $region8: #{tpu_custom_call.1} parent=1 // pred_region
      %s19 = ssub.s32 2048, 2048
      %20 = vsyncadd [#allocation3], %s19
      %s21 = sshll.u32 [#allocation2], 4
      %s22 = int_to_ptr.vmem [resolvable:$true] %s21
      %27 = dma.hbm_to_vmem [thread:$0]  %s1, 2048, %s22, [#allocation3], 128, 128, 8
    $region9: #{tpu_custom_call.1} parent=1 // pred_fallthru
      _
    // Predicated region
    $region10: #{tpu_custom_call.1} parent=1 // pred_check
      _
    $region11: #{tpu_custom_call.1} parent=1 // pred_check_branch
      %29 = sbr.rel (0) target = $region13
    $region12: #{tpu_custom_call.1} parent=1 // pred_region
      _
    $region13: #{tpu_custom_call.1} parent=1 // pred_fallthru
      _
    // Predicated region
    $region14: #{tpu_custom_call.1} parent=1 // pred_check
      _
    $region15: #{tpu_custom_call.1} parent=1 // pred_check_branch
      %31 = sbr.rel (0) target = $region17
    $region16: #{tpu_custom_call.1} parent=1 // pred_region
      %32 = dma.done [#allocation3], 2048
    $region17: #{tpu_custom_call.1} parent=1 // pred_fallthru
      _
    %v34 = vld [vmem:[%s0] sm:$0xf]
    %v35 = vld [vmem:[%s0 + $0x4] sm:$0xf]
    %v36 = vld [vmem:[%s0 + $0x8] sm:$0xf]
    %v37 = vld [vmem:[%s0 + $0xc] sm:$0xf]
    %v38 = vld [vmem:[%s0 + $0x10] sm:$0xf]
    %v39 = vld [vmem:[%s0 + $0x14] sm:$0xf]
    %v40 = vld [vmem:[%s0 + $0x18] sm:$0xf]
    %v41 = vld [vmem:[%s0 + $0x1c] sm:$0xf]
    %v42 = vld [vmem:[%s0 + $0x20] sm:$0xf]
    %v43 = vld [vmem:[%s0 + $0x24] sm:$0xf]
    %v44 = vld [vmem:[%s0 + $0x28] sm:$0xf]
    %v45 = vld [vmem:[%s0 + $0x2c] sm:$0xf]
    %v46 = vld [vmem:[%s0 + $0x30] sm:$0xf]
    %v47 = vld [vmem:[%s0 + $0x34] sm:$0xf]
    %v48 = vld [vmem:[%s0 + $0x38] sm:$0xf]
    %v49 = vld [vmem:[%s0 + $0x3c] sm:$0xf]
    %v50 = vld [vmem:[#allocation2] sm:$0xff]
    %v51 = vld [vmem:[#allocation2 + $0x8] sm:$0xff]
    %v52 = vld [vmem:[#allocation2 + $0x10] sm:$0xff]
    %v53 = vld [vmem:[#allocation2 + $0x18] sm:$0xff]
    %v54 = vld [vmem:[#allocation2 + $0x20] sm:$0xff]
    %v55 = vld [vmem:[#allocation2 + $0x28] sm:$0xff]
    %v56 = vld [vmem:[#allocation2 + $0x30] sm:$0xff]
    %v57 = vld [vmem:[#allocation2 + $0x38] sm:$0xff]
    %v58 = vld [vmem:[#allocation2 + $0x40] sm:$0xff]
    %v59 = vld [vmem:[#allocation2 + $0x48] sm:$0xff]
    %v60 = vld [vmem:[#allocation2 + $0x50] sm:$0xff]
    %v61 = vld [vmem:[#allocation2 + $0x58] sm:$0xff]
    %v62 = vld [vmem:[#allocation2 + $0x60] sm:$0xff]
    %v63 = vld [vmem:[#allocation2 + $0x68] sm:$0xff]
    %v64 = vld [vmem:[#allocation2 + $0x70] sm:$0xff]
    %v65 = vld [vmem:[#allocation2 + $0x78] sm:$0xff]
    %v82 = vunpack.c.l.b16 %v34
    %v83 = vunpack.c.l.b16 %v35
    %v84 = vunpack.c.l.b16 %v36
    %v85 = vunpack.c.l.b16 %v37
    %v86 = vunpack.c.l.b16 %v38
    %v87 = vunpack.c.l.b16 %v39
    %v88 = vunpack.c.l.b16 %v40
    %v89 = vunpack.c.l.b16 %v41
    %v90 = vunpack.c.l.b16 %v42
    %v91 = vunpack.c.l.b16 %v43
    %v92 = vunpack.c.l.b16 %v44
    %v93 = vunpack.c.l.b16 %v45
    %v94 = vunpack.c.l.b16 %v46
    %v95 = vunpack.c.l.b16 %v47
    %v96 = vunpack.c.l.b16 %v48
    %v97 = vunpack.c.l.b16 %v49
    %v98 = vpack.c.b16 %v83, %v82
    %v99 = vpack.c.b16 %v85, %v84
    %v100 = vpack.c.b16 %v87, %v86
    %v101 = vpack.c.b16 %v89, %v88
    %v102 = vpack.c.b16 %v91, %v90
    %v103 = vpack.c.b16 %v93, %v92
    %v104 = vpack.c.b16 %v95, %v94
    %v105 = vpack.c.b16 %v97, %v96
    %v130 = vunpack.c.l.b16 %v50
    %v131 = vunpack.c.h.b16 %v50
    %v132 = vunpack.c.l.b16 %v51
    %v133 = vunpack.c.h.b16 %v51
    %v134 = vunpack.c.l.b16 %v52
    %v135 = vunpack.c.h.b16 %v52
    %v136 = vunpack.c.l.b16 %v53
    %v137 = vunpack.c.h.b16 %v53
    %v138 = vunpack.c.l.b16 %v54
    %v139 = vunpack.c.h.b16 %v54
    %v140 = vunpack.c.l.b16 %v55
    %v141 = vunpack.c.h.b16 %v55
    %v142 = vunpack.c.l.b16 %v56
    %v143 = vunpack.c.h.b16 %v56
    %v144 = vunpack.c.l.b16 %v57
    %v145 = vunpack.c.h.b16 %v57
    %v146 = vunpack.c.l.b16 %v58
    %v147 = vunpack.c.h.b16 %v58
    %v148 = vunpack.c.l.b16 %v59
    %v149 = vunpack.c.h.b16 %v59
    %v150 = vunpack.c.l.b16 %v60
    %v151 = vunpack.c.h.b16 %v60
    %v152 = vunpack.c.l.b16 %v61
    %v153 = vunpack.c.h.b16 %v61
    %v154 = vunpack.c.l.b16 %v62
    %v155 = vunpack.c.h.b16 %v62
    %v156 = vunpack.c.l.b16 %v63
    %v157 = vunpack.c.h.b16 %v63
    %v158 = vunpack.c.l.b16 %v64
    %v159 = vunpack.c.h.b16 %v64
    %v160 = vunpack.c.l.b16 %v65
    %v161 = vunpack.c.h.b16 %v65
    %v162 = vpack.c.b16 %v132, %v130
    %v163 = vpack.c.b16 %v133, %v131
    %v164 = vpack.c.b16 %v136, %v134
    %v165 = vpack.c.b16 %v137, %v135
    %v166 = vpack.c.b16 %v140, %v138
    %v167 = vpack.c.b16 %v141, %v139
    %v168 = vpack.c.b16 %v144, %v142
    %v169 = vpack.c.b16 %v145, %v143
    %v170 = vpack.c.b16 %v148, %v146
    %v171 = vpack.c.b16 %v149, %v147
    %v172 = vpack.c.b16 %v152, %v150
    %v173 = vpack.c.b16 %v153, %v151
    %v174 = vpack.c.b16 %v156, %v154
    %v175 = vpack.c.b16 %v157, %v155
    %v176 = vpack.c.b16 %v160, %v158
    %v177 = vpack.c.b16 %v161, %v159
    %194 = vmatprep.subr.bf16.mxu0 %v163
    %195 = vmatpush1.bf16.msra.mxu0 %v162
    %196 = vmatprep.subr.bf16.mxu0 %v165
    %197 = vmatpush1.bf16.msra.mxu0 %v164
    %198 = vmatprep.subr.bf16.mxu0 %v167
    %199 = vmatpush1.bf16.msra.mxu0 %v166
    %200 = vmatprep.subr.bf16.mxu0 %v169
    %201 = vmatpush1.bf16.msra.mxu0 %v168
    %202 = vmatprep.subr.bf16.mxu0 %v171
    %203 = vmatpush1.bf16.msra.mxu0 %v170
    %204 = vmatprep.subr.bf16.mxu0 %v173
    %205 = vmatpush1.bf16.msra.mxu0 %v172
    %206 = vmatprep.subr.bf16.mxu0 %v175
    %207 = vmatpush1.bf16.msra.mxu0 %v174
    %208 = vmatprep.subr.bf16.mxu0 %v177
    %209 = vmatpush1.bf16.msra.mxu0 %v176
    %210 = vmatprep.subr.bf16.mxu0 0
    %211 = vmatpush1.bf16.msra.mxu0 0
    %212 = vmatprep.subr.bf16.mxu0 0
    %213 = vmatpush1.bf16.msra.mxu0 0
    %214 = vmatprep.subr.bf16.mxu0 0
    %215 = vmatpush1.bf16.msra.mxu0 0
    %216 = vmatprep.subr.bf16.mxu0 0
    %217 = vmatpush1.bf16.msra.mxu0 0
    %218 = vmatprep.subr.bf16.mxu0 0
    %219 = vmatpush1.bf16.msra.mxu0 0
    %220 = vmatprep.subr.bf16.mxu0 0
    %221 = vmatpush1.bf16.msra.mxu0 0
    %222 = vmatprep.subr.bf16.mxu0 0
    %223 = vmatpush1.bf16.msra.mxu0 0
    %224 = vmatprep.subr.bf16.mxu0 0
    %225 = vmatpush1.bf16.msra.mxu0 0
    %226 = vmatprep.mubr.bf16.mxu0 0
    %227 = vmatmul.mubr.bf16.gmra.mrb[0].mxu0 %v98
    %v228 = vpop.f32.mrb[0].mxu0
    %v229 = vadd.f32 0.0, %v228
    %v230 = vpop.f32.mrb[0].mxu0
    %v231 = vadd.f32 0.0, %v230
    %v232 = vpop.f32.mrb[0].mxu0
    %v233 = vadd.f32 0.0, %v232
    %v234 = vpop.f32.mrb[0].mxu0
    %v235 = vadd.f32 0.0, %v234
    %236 = vmatprep.mubr.bf16.mxu0 0
    %237 = vmatmul.mubr.bf16.gmra.mrb[0].mxu0 %v99
    %v238 = vpop.f32.mrb[0].mxu0
    %v239 = vadd.f32 0.0, %v238
    %v240 = vpop.f32.mrb[0].mxu0
    %v241 = vadd.f32 0.0, %v240
    %v242 = vpop.f32.mrb[0].mxu0
    %v243 = vadd.f32 0.0, %v242
    %v244 = vpop.f32.mrb[0].mxu0
    %v245 = vadd.f32 0.0, %v244
    %246 = vmatprep.mubr.bf16.mxu0 0
    %247 = vmatmul.mubr.bf16.gmra.mrb[0].mxu0 %v100
    %v248 = vpop.f32.mrb[0].mxu0
    %v249 = vadd.f32 0.0, %v248
    %v250 = vpop.f32.mrb[0].mxu0
    %v251 = vadd.f32 0.0, %v250
    %v252 = vpop.f32.mrb[0].mxu0
    %v253 = vadd.f32 0.0, %v252
    %v254 = vpop.f32.mrb[0].mxu0
    %v255 = vadd.f32 0.0, %v254
    %256 = vmatprep.mubr.bf16.mxu0 0
    %257 = vmatmul.mubr.bf16.gmra.mrb[0].mxu0 %v101
    %v258 = vpop.f32.mrb[0].mxu0
    %v259 = vadd.f32 0.0, %v258
    %v260 = vpop.f32.mrb[0].mxu0
    %v261 = vadd.f32 0.0, %v260
    %v262 = vpop.f32.mrb[0].mxu0
    %v263 = vadd.f32 0.0, %v262
    %v264 = vpop.f32.mrb[0].mxu0
    %v265 = vadd.f32 0.0, %v264
    %266 = vmatprep.mubr.bf16.mxu0 0
    %267 = vmatmul.mubr.bf16.gmra.mrb[0].mxu0 %v102
    %v268 = vpop.f32.mrb[0].mxu0
    %v269 = vadd.f32 0.0, %v268
    %v270 = vpop.f32.mrb[0].mxu0
    %v271 = vadd.f32 0.0, %v270
    %v272 = vpop.f32.mrb[0].mxu0
    %v273 = vadd.f32 0.0, %v272
    %v274 = vpop.f32.mrb[0].mxu0
    %v275 = vadd.f32 0.0, %v274
    %276 = vmatprep.mubr.bf16.mxu0 0
    %277 = vmatmul.mubr.bf16.gmra.mrb[0].mxu0 %v103
    %v278 = vpop.f32.mrb[0].mxu0
    %v279 = vadd.f32 0.0, %v278
    %v280 = vpop.f32.mrb[0].mxu0
    %v281 = vadd.f32 0.0, %v280
    %v282 = vpop.f32.mrb[0].mxu0
    %v283 = vadd.f32 0.0, %v282
    %v284 = vpop.f32.mrb[0].mxu0
    %v285 = vadd.f32 0.0, %v284
    %286 = vmatprep.mubr.bf16.mxu0 0
    %287 = vmatmul.mubr.bf16.gmra.mrb[0].mxu0 %v104
    %v288 = vpop.f32.mrb[0].mxu0
    %v289 = vadd.f32 0.0, %v288
    %v290 = vpop.f32.mrb[0].mxu0
    %v291 = vadd.f32 0.0, %v290
    %v292 = vpop.f32.mrb[0].mxu0
    %v293 = vadd.f32 0.0, %v292
    %v294 = vpop.f32.mrb[0].mxu0
    %v295 = vadd.f32 0.0, %v294
    %296 = vmatprep.mubr.bf16.mxu0 0
    %297 = vmatmul.mubr.bf16.gmra.mrb[0].mxu0 %v105
    %v298 = vpop.f32.mrb[0].mxu0
    %v299 = vadd.f32 0.0, %v298
    %v300 = vpop.f32.mrb[0].mxu0
    %v301 = vadd.f32 0.0, %v300
    %v302 = vpop.f32.mrb[0].mxu0
    %v303 = vadd.f32 0.0, %v302
    %v304 = vpop.f32.mrb[0].mxu0
    %v305 = vadd.f32 0.0, %v304
    %306 = vdwg.mxu0
    %v307 = vpack.c.bf16 %v233, %v229
    %v308 = vpack.c.bf16 %v243, %v239
    %v309 = vpack.c.bf16 %v253, %v249
    %v310 = vpack.c.bf16 %v263, %v259
    %v311 = vpack.c.bf16 %v273, %v269
    %v312 = vpack.c.bf16 %v283, %v279
    %v313 = vpack.c.bf16 %v293, %v289
    %v314 = vpack.c.bf16 %v303, %v299
    %v323 = vunpack.c.l.b16 %v307
    %v324 = vunpack.c.h.b16 %v307
    %v325 = vunpack.c.l.b16 %v308
    %v326 = vunpack.c.h.b16 %v308
    %v327 = vunpack.c.l.b16 %v309
    %v328 = vunpack.c.h.b16 %v309
    %v329 = vunpack.c.l.b16 %v310
    %v330 = vunpack.c.h.b16 %v310
    %v331 = vunpack.c.l.b16 %v311
    %v332 = vunpack.c.h.b16 %v311
    %v333 = vunpack.c.l.b16 %v312
    %v334 = vunpack.c.h.b16 %v312
    %v335 = vunpack.c.l.b16 %v313
    %v336 = vunpack.c.h.b16 %v313
    %v337 = vunpack.c.l.b16 %v314
    %v338 = vunpack.c.h.b16 %v314
    %v339 = vpack.c.b16 %v323, %v323
    %v340 = vpack.c.b16 %v324, %v324
    %v341 = vpack.c.b16 %v325, %v325
    %v342 = vpack.c.b16 %v326, %v326
    %v343 = vpack.c.b16 %v327, %v327
    %v344 = vpack.c.b16 %v328, %v328
    %v345 = vpack.c.b16 %v329, %v329
    %v346 = vpack.c.b16 %v330, %v330
    %v347 = vpack.c.b16 %v331, %v331
    %v348 = vpack.c.b16 %v332, %v332
    %v349 = vpack.c.b16 %v333, %v333
    %v350 = vpack.c.b16 %v334, %v334
    %v351 = vpack.c.b16 %v335, %v335
    %v352 = vpack.c.b16 %v336, %v336
    %v353 = vpack.c.b16 %v337, %v337
    %v354 = vpack.c.b16 %v338, %v338
    %371 = vst [vmem:[#allocation5] sm:$0xf] %v339
    %372 = vst [vmem:[#allocation5 + $0x4] sm:$0xf] %v340
    %373 = vst [vmem:[#allocation5 + $0x8] sm:$0xf] %v341
    %374 = vst [vmem:[#allocation5 + $0xc] sm:$0xf] %v342
    %375 = vst [vmem:[#allocation5 + $0x10] sm:$0xf] %v343
    %376 = vst [vmem:[#allocation5 + $0x14] sm:$0xf] %v344
    %377 = vst [vmem:[#allocation5 + $0x18] sm:$0xf] %v345
    %378 = vst [vmem:[#allocation5 + $0x1c] sm:$0xf] %v346
    %379 = vst [vmem:[#allocation5 + $0x20] sm:$0xf] %v347
    %380 = vst [vmem:[#allocation5 + $0x24] sm:$0xf] %v348
    %381 = vst [vmem:[#allocation5 + $0x28] sm:$0xf] %v349
    %382 = vst [vmem:[#allocation5 + $0x2c] sm:$0xf] %v350
    %383 = vst [vmem:[#allocation5 + $0x30] sm:$0xf] %v351
    %384 = vst [vmem:[#allocation5 + $0x34] sm:$0xf] %v352
    %385 = vst [vmem:[#allocation5 + $0x38] sm:$0xf] %v353
    %386 = vst [vmem:[#allocation5 + $0x3c] sm:$0xf] %v354
    %387 = vst [vmem:[#allocation6] sm:$0xff] %v231
    %388 = vst [vmem:[#allocation6 + $0x8] sm:$0xff] %v235
    %389 = vst [vmem:[#allocation6 + $0x10] sm:$0xff] %v241
    %390 = vst [vmem:[#allocation6 + $0x18] sm:$0xff] %v245
    %391 = vst [vmem:[#allocation6 + $0x20] sm:$0xff] %v251
    %392 = vst [vmem:[#allocation6 + $0x28] sm:$0xff] %v255
    %393 = vst [vmem:[#allocation6 + $0x30] sm:$0xff] %v261
    %394 = vst [vmem:[#allocation6 + $0x38] sm:$0xff] %v265
    %395 = vst [vmem:[#allocation6 + $0x40] sm:$0xff] %v271
    %396 = vst [vmem:[#allocation6 + $0x48] sm:$0xff] %v275
    %397 = vst [vmem:[#allocation6 + $0x50] sm:$0xff] %v281
    %398 = vst [vmem:[#allocation6 + $0x58] sm:$0xff] %v285
    %399 = vst [vmem:[#allocation6 + $0x60] sm:$0xff] %v291
    %400 = vst [vmem:[#allocation6 + $0x68] sm:$0xff] %v295
    %401 = vst [vmem:[#allocation6 + $0x70] sm:$0xff] %v301
    %402 = vst [vmem:[#allocation6 + $0x78] sm:$0xff] %v305
    %v403 = vld [vmem:[%s2] sm:$0xf]
    %v404 = vld [vmem:[%s2 + $0x4] sm:$0xf]
    %v405 = vld [vmem:[%s2 + $0x8] sm:$0xf]
    %v406 = vld [vmem:[%s2 + $0xc] sm:$0xf]
    %v407 = vld [vmem:[%s2 + $0x10] sm:$0xf]
    %v408 = vld [vmem:[%s2 + $0x14] sm:$0xf]
    %v409 = vld [vmem:[%s2 + $0x18] sm:$0xf]
    %v410 = vld [vmem:[%s2 + $0x1c] sm:$0xf]
    %v411 = vld [vmem:[%s2 + $0x20] sm:$0xf]
    %v412 = vld [vmem:[%s2 + $0x24] sm:$0xf]
    %v413 = vld [vmem:[%s2 + $0x28] sm:$0xf]
    %v414 = vld [vmem:[%s2 + $0x2c] sm:$0xf]
    %v415 = vld [vmem:[%s2 + $0x30] sm:$0xf]
    %v416 = vld [vmem:[%s2 + $0x34] sm:$0xf]
    %v417 = vld [vmem:[%s2 + $0x38] sm:$0xf]
    %v418 = vld [vmem:[%s2 + $0x3c] sm:$0xf]
    %v435 = vunpack.c.l.b16 %v403
    %v436 = vunpack.c.l.b16 %v404
    %v437 = vunpack.c.l.b16 %v405
    %v438 = vunpack.c.l.b16 %v406
    %v439 = vunpack.c.l.b16 %v407
    %v440 = vunpack.c.l.b16 %v408
    %v441 = vunpack.c.l.b16 %v409
    %v442 = vunpack.c.l.b16 %v410
    %v443 = vunpack.c.l.b16 %v411
    %v444 = vunpack.c.l.b16 %v412
    %v445 = vunpack.c.l.b16 %v413
    %v446 = vunpack.c.l.b16 %v414
    %v447 = vunpack.c.l.b16 %v415
    %v448 = vunpack.c.l.b16 %v416
    %v449 = vunpack.c.l.b16 %v417
    %v450 = vunpack.c.l.b16 %v418
    %v451 = vpack.c.b16 %v436, %v435
    %v452 = vpack.c.b16 %v438, %v437
    %v453 = vpack.c.b16 %v440, %v439
    %v454 = vpack.c.b16 %v442, %v441
    %v455 = vpack.c.b16 %v444, %v443
    %v456 = vpack.c.b16 %v446, %v445
    %v457 = vpack.c.b16 %v448, %v447
    %v458 = vpack.c.b16 %v450, %v449
    %467 = vxpose.xlu0.c.b16.start [1/8] %v451, 128
    %468 = vxpose.xlu0.c.b16.cont [2/8] %v452, 128
    %469 = vxpose.xlu0.c.b16.cont [3/8] %v453, 128
    %470 = vxpose.xlu0.c.b16.cont [4/8] %v454, 128
    %471 = vxpose.xlu0.c.b16.cont [5/8] %v455, 128
    %472 = vxpose.xlu0.c.b16.cont [6/8] %v456, 128
    %473 = vxpose.xlu0.c.b16.cont [7/8] %v457, 128
    %474 = vxpose.xlu0.c.b16.end [8/8] %v458, 128
    %v475 = vpop.trf.xlu0
    %v476 = vpop.trf.xlu0
    %v477 = vpop.trf.xlu0
    %v478 = vpop.trf.xlu0
    %v479 = vpop.trf.xlu0
    %v480 = vpop.trf.xlu0
    %v481 = vpop.trf.xlu0
    %v482 = vpop.trf.xlu0
    %483 = vmatprep.subr.bf16.mxu0 0
    %484 = vmatpush1.bf16.xpose.msra.mxu0 %v98
    %485 = vmatprep.subr.bf16.mxu0 0
    %486 = vmatpush1.bf16.xpose.msra.mxu0 %v99
    %487 = vmatprep.subr.bf16.mxu0 0
    %488 = vmatpush1.bf16.xpose.msra.mxu0 %v100
    %489 = vmatprep.subr.bf16.mxu0 0
    %490 = vmatpush1.bf16.xpose.msra.mxu0 %v101
    %491 = vmatprep.subr.bf16.mxu0 0
    %492 = vmatpush1.bf16.xpose.msra.mxu0 %v102
    %493 = vmatprep.subr.bf16.mxu0 0
    %494 = vmatpush1.bf16.xpose.msra.mxu0 %v103
    %495 = vmatprep.subr.bf16.mxu0 0
    %496 = vmatpush1.bf16.xpose.msra.mxu0 %v104
    %497 = vmatprep.subr.bf16.mxu0 0
    %498 = vmatpush1.bf16.xpose.msra.mxu0 %v105
    %499 = vmatprep.subr.bf16.mxu0 0
    %500 = vmatpush1.bf16.xpose.msra.mxu0 0
    %501 = vmatprep.subr.bf16.mxu0 0
    %502 = vmatpush1.bf16.xpose.msra.mxu0 0
    %503 = vmatprep.subr.bf16.mxu0 0
    %504 = vmatpush1.bf16.xpose.msra.mxu0 0
    %505 = vmatprep.subr.bf16.mxu0 0
    %506 = vmatpush1.bf16.xpose.msra.mxu0 0
    %507 = vmatprep.subr.bf16.mxu0 0
    %508 = vmatpush1.bf16.xpose.msra.mxu0 0
    %509 = vmatprep.subr.bf16.mxu0 0
    %510 = vmatpush1.bf16.xpose.msra.mxu0 0
    %511 = vmatprep.subr.bf16.mxu0 0
    %512 = vmatpush1.bf16.xpose.msra.mxu0 0
    %513 = vmatprep.subr.bf16.mxu0 0
    %514 = vmatpush1.bf16.xpose.msra.mxu0 0
    %515 = vmatprep.mubr.bf16.mxu0 0
    %516 = vmatmul.mubr.bf16.gmra.mrb[0].mxu0 %v475
    %v517 = vpop.f32.mrb[0].mxu0
    %v518 = vadd.f32 0.0, %v517
    %v519 = vpop.f32.mrb[0].mxu0
    %v520 = vpop.f32.mrb[0].mxu0
    %v521 = vpop.f32.mrb[0].mxu0
    %522 = vdwg.mxu0
    %523 = vst [vmem:[#allocation8] sm:$0xff] %v518
    // Predicated region
    $region18: #{tpu_custom_call.1} parent=1 // pred_check
      _
    $region19: #{tpu_custom_call.1} parent=1 // pred_check_branch
      %525 = sbr.rel (0) target = $region21
    $region20: #{tpu_custom_call.1} parent=1 // pred_region
      %s527 = ssub.s32 1024, 1024
      %528 = vsyncadd [#allocation4], %s527
      %s529 = sshll.u32 [#allocation5], 4
      %s530 = int_to_ptr.vmem [resolvable:$true] %s529
      %535 = dma.vmem_to_hbm [thread:$0]  %s530, 1024, %s3, [#allocation4], 64, 64, 4
    $region21: #{tpu_custom_call.1} parent=1 // pred_fallthru
      _
    // Predicated region
    $region22: #{tpu_custom_call.1} parent=1 // pred_check
      _
    $region23: #{tpu_custom_call.1} parent=1 // pred_check_branch
      %537 = sbr.rel (0) target = $region25
    $region24: #{tpu_custom_call.1} parent=1 // pred_region
      %s539 = ssub.s32 2048, 2048
      %540 = vsyncadd [#allocation7], %s539
      %s541 = sshll.u32 [#allocation6], 4
      %s542 = int_to_ptr.vmem [resolvable:$true] %s541
      %547 = dma.vmem_to_hbm [thread:$0]  %s542, 2048, %s4, [#allocation7], 128, 128, 8
    $region25: #{tpu_custom_call.1} parent=1 // pred_fallthru
      _
    // Predicated region
    $region26: #{tpu_custom_call.1} parent=1 // pred_check
      _
    $region27: #{tpu_custom_call.1} parent=1 // pred_check_branch
      %549 = sbr.rel (0) target = $region29
    $region28: #{tpu_custom_call.1} parent=1 // pred_region
      %s551 = ssub.s32 128, 128
      %552 = vsyncadd [#allocation7], %s551
      %s554 = sshll.u32 [#allocation8], 4
      %s555 = int_to_ptr.vmem [resolvable:$true] %s554
      %557 = dma.vmem_to_hbm [thread:$0]  %s555, 128, %s5, [#allocation7]
    $region29: #{tpu_custom_call.1} parent=1 // pred_fallthru
      _
    // Predicated region
    $region30: #{tpu_custom_call.1} parent=1 // pred_check
      _
    $region31: #{tpu_custom_call.1} parent=1 // pred_check_branch
      %559 = sbr.rel (0) target = $region33
    $region32: #{tpu_custom_call.1} parent=1 // pred_region
      %560 = dma.done [#allocation4], 1024
    $region33: #{tpu_custom_call.1} parent=1 // pred_fallthru
      _
    // Predicated region
    $region34: #{tpu_custom_call.1} parent=1 // pred_check
      _
    $region35: #{tpu_custom_call.1} parent=1 // pred_check_branch
      %562 = sbr.rel (0) target = $region37
    $region36: #{tpu_custom_call.1} parent=1 // pred_region
      %563 = dma.done [#allocation7], 2048
    $region37: #{tpu_custom_call.1} parent=1 // pred_fallthru
      _
    // Predicated region
    $region38: #{tpu_custom_call.1} parent=1 // pred_check
      _
    $region39: #{tpu_custom_call.1} parent=1 // pred_check_branch
      %565 = sbr.rel (0) target = $region41
    $region40: #{tpu_custom_call.1} parent=1 // pred_region
      %566 = dma.done [#allocation7], 128
    $region41: #{tpu_custom_call.1} parent=1 // pred_fallthru
      _
    %567 = vsyncpa [#allocation3], 1
    %568 = vsyncpa [#allocation4], 1
    %569 = vsyncpa [#allocation7], 1

</llo_original>
